<compile_context>
chip_gen: v5e
topology: v5e:2x2
jax: 0.10.0
libtpu: 0.0.40
codegen_flags: <defaults>
</compile_context>

<pallas_src>
import functools
import math

import jax
import jax.numpy as jnp
from jax import lax
from jax.experimental import pallas as pl
from jax.experimental.pallas import tpu as pltpu

NEG_INF = -1e30  # finite "minus infinity" for causal masking (NaN-safe)


# --------------------------------------------------------------------------
# Small helpers
# --------------------------------------------------------------------------
def _layernorm(x, g, b, eps=1e-5):
    mean = jnp.mean(x, axis=-1, keepdims=True)
    var = jnp.mean((x - mean) ** 2, axis=-1, keepdims=True)
    return (x - mean) * lax.rsqrt(var + eps) * g + b


def _pick_tile(dim, target, mult):
    """Largest divisor of `dim` that is <= target and a multiple of `mult`;
    falls back to the full dim (always a legal block shape)."""
    if dim <= target:
        return dim
    for cand in range(min(target, dim), mult - 1, -1):
        if dim % cand == 0 and cand % mult == 0:
            return cand
    return dim


def _device_kind():
    try:
        return jax.devices()[0].device_kind.lower()
    except Exception:
        return ""


def _vmem_limit_bytes():
    kind = _device_kind()
    if "v7" in kind:
        return 56 * 1024 * 1024            # 64 MiB physical on v7x
    if "v4" in kind or "v5" in kind or "v6" in kind:
        return 100 * 1024 * 1024           # 128 MiB physical
    return None


def _attn_tile_targets():
    kind = _device_kind()
    if "v6" in kind or "v7" in kind:
        return 256, 256                    # 256-wide MXU
    return 128, 128                        # v5e / older: 128-wide MXU


def _compiler_params(dim_sem):
    return pltpu.CompilerParams(dimension_semantics=dim_sem,
                                vmem_limit_bytes=_vmem_limit_bytes())


_BUFFERED_ONE_CACHE = None


def _buffered_one():
    """Return pl.Buffered(1) if this Pallas build supports single-buffered
    resident weight blocks (probed once on hardware), else None."""
    global _BUFFERED_ONE_CACHE
    if _BUFFERED_ONE_CACHE is not None:
        return _BUFFERED_ONE_CACHE[0]
    mode = None
    if hasattr(pl, "Buffered"):
        try:
            def _probe(w_ref, o_ref):
                o_ref[...] = w_ref[...] + 1.0

            out = pl.pallas_call(
                _probe,
                out_shape=jax.ShapeDtypeStruct((8, 128), jnp.float32),
                grid=(2,),
                in_specs=[pl.BlockSpec((8, 128), lambda i: (0, 0),
                                       pipeline_mode=pl.Buffered(1))],
                out_specs=pl.BlockSpec((8, 128), lambda i: (0, 0)),
            )(jnp.zeros((8, 128), jnp.float32))
            jax.block_until_ready(out)
            mode = pl.Buffered(1)
        except Exception:
            mode = None
    _BUFFERED_ONE_CACHE = (mode,)
    return mode


def _bspec(shape, index_map, single_buffer=False):
    """BlockSpec; single_buffer=True requests Buffered(1) for resident blocks."""
    if single_buffer:
        mode = _buffered_one()
        if mode is not None:
            return pl.BlockSpec(shape, index_map, pipeline_mode=mode)
    return pl.BlockSpec(shape, index_map)


# --------------------------------------------------------------------------
# Kernel 1: LN1 + lane-dense QKV projection -> head-major bf16 Q/K/V.
# --------------------------------------------------------------------------
def qkv_kernel(x_ref, g_ref, b_ref, w_ref, q_ref, k_ref, v_ref,
               *, n_heads, head_dim):
    C = n_heads * head_dim
    h = _layernorm(x_ref[0], g_ref[0], b_ref[0]).astype(jnp.bfloat16)  # (t, C)
    qkv = jnp.dot(h, w_ref[...], preferred_element_type=jnp.float32)   # (t, 3C)
    qkv = qkv.astype(jnp.bfloat16)
    # head-major relayout (static lane slices, once per token tile)
    for hh in range(n_heads):
        lo = hh * head_dim
        q_ref[0, hh] = qkv[:, lo:lo + head_dim]
        k_ref[0, hh] = qkv[:, C + lo:C + lo + head_dim]
        v_ref[0, hh] = qkv[:, 2 * C + lo:2 * C + lo + head_dim]


def run_qkv(x, ln1g, ln1b, wqkv, n_heads, *, tq=None):
    B, T, C = x.shape
    H = n_heads
    hd = C // H
    tq_t, _ = _attn_tile_targets()
    tq = _pick_tile(T, tq_t, 8) if tq is None else tq
    nq = T // tq

    grid_spec = pltpu.PrefetchScalarGridSpec(
        num_scalar_prefetch=0,
        grid=(B, nq),
        in_specs=[
            pl.BlockSpec((1, tq, C), lambda b, qi: (b, qi, 0)),
            _bspec((1, C), lambda b, qi: (0, 0), single_buffer=True),
            _bspec((1, C), lambda b, qi: (0, 0), single_buffer=True),
            _bspec((C, 3 * C), lambda b, qi: (0, 0), single_buffer=True),
        ],
        out_specs=(pl.BlockSpec((1, H, tq, hd), lambda b, qi: (b, 0, qi, 0)),
                   pl.BlockSpec((1, H, tq, hd), lambda b, qi: (b, 0, qi, 0)),
                   pl.BlockSpec((1, H, tq, hd), lambda b, qi: (b, 0, qi, 0))),
    )
    kernel = functools.partial(qkv_kernel, n_heads=H, head_dim=hd)
    qkv_shape = jax.ShapeDtypeStruct((B, H, T, hd), jnp.bfloat16)
    return pl.pallas_call(
        kernel,
        out_shape=(qkv_shape, qkv_shape, qkv_shape),
        grid_spec=grid_spec,
        compiler_params=_compiler_params(("parallel", "parallel")),
    )(x, ln1g, ln1b, wqkv)


# --------------------------------------------------------------------------
# Kernel 2: flash attention (online softmax, causal), pre-projected Q/K/V.
# --------------------------------------------------------------------------
def flash_kernel(q_ref, k_ref, v_ref, o_ref, m_scr, l_scr, acc_scr, *, tq, tk):
    qi = pl.program_id(1)
    ki = pl.program_id(2)
    q_first = qi * tq
    q_last = q_first + tq - 1
    k_first = ki * tk
    k_last = k_first + tk - 1

    @pl.when(ki == 0)
    def _init():
        m_scr[...] = jnp.full_like(m_scr, NEG_INF)
        l_scr[...] = jnp.zeros_like(l_scr)
        acc_scr[...] = jnp.zeros_like(acc_scr)

    def _scores():
        # Q is already scaled by 1/sqrt(hd) (folded into the weight).
        return jnp.einsum('hqd,hkd->hqk', q_ref[0], k_ref[0],
                          preferred_element_type=jnp.float32)   # (H, tq, tk)

    def _update(s):
        m_prev = m_scr[...]
        m_new = jnp.maximum(m_prev, jnp.max(s, axis=-1, keepdims=True))
        alpha = jnp.exp(m_prev - m_new)
        p = jnp.exp(s - m_new)                                   # fp32 softmax
        l_scr[...] = alpha * l_scr[...] + jnp.sum(p, axis=-1, keepdims=True)
        acc_scr[...] = alpha * acc_scr[...] + jnp.einsum(
            'hqk,hkd->hqd', p.astype(jnp.bfloat16), v_ref[0],
            preferred_element_type=jnp.float32)
        m_scr[...] = m_new

    # interior tiles (fully below the diagonal): no mask generation at all
    @pl.when(k_last <= q_first)
    def _interior():
        _update(_scores())

    # the diagonal-crossing tile(s): generate the causal mask only here
    @pl.when((k_last > q_first) & (k_first <= q_last))
    def _diag():
        s = _scores()
        rows = q_first + lax.broadcasted_iota(jnp.int32, (tq, tk), 0)
        cols = k_first + lax.broadcasted_iota(jnp.int32, (tq, tk), 1)
        s = jnp.where((cols <= rows)[None], s, NEG_INF)
        _update(s)

    # finalize on the last *live* kv tile (dead future tiles do nothing)
    @pl.when(ki == q_last // tk)
    def _finalize():
        o_ref[0] = (acc_scr[...] / l_scr[...]).astype(o_ref.dtype)


def run_flash(q, k, v, *, tq=None, tk=None):
    B, H, T, hd = q.shape
    tq_t, tk_t = _attn_tile_targets()
    tq = _pick_tile(T, tq_t, 8) if tq is None else tq
    tk = _pick_tile(T, tk_t, 8) if tk is None else tk
    nq, nkv = T // tq, T // tk

    def kv_index(b, qi, ki):
        # Clamp dead (fully-future) kv tiles onto the last live tile so the
        # block index repeats and no fresh DMA is issued for them.
        last_live = (qi * tq + tq - 1) // tk
        return (b, 0, jnp.minimum(ki, last_live), 0)

    grid_spec = pltpu.PrefetchScalarGridSpec(
        num_scalar_prefetch=0,
        grid=(B, nq, nkv),
        in_specs=[
            pl.BlockSpec((1, H, tq, hd), lambda b, qi, ki: (b, 0, qi, 0)),
            pl.BlockSpec((1, H, tk, hd), kv_index),
            pl.BlockSpec((1, H, tk, hd), kv_index),
        ],
        out_specs=pl.BlockSpec((1, H, tq, hd), lambda b, qi, ki: (b, 0, qi, 0)),
        scratch_shapes=[
            pltpu.VMEM((H, tq, 1), jnp.float32),    # running max
            pltpu.VMEM((H, tq, 1), jnp.float32),    # running denom
            pltpu.VMEM((H, tq, hd), jnp.float32),   # attention accumulator
        ],
    )
    kernel = functools.partial(flash_kernel, tq=tq, tk=tk)
    return pl.pallas_call(
        kernel,
        out_shape=jax.ShapeDtypeStruct((B, H, T, hd), jnp.bfloat16),
        grid_spec=grid_spec,
        compiler_params=_compiler_params(("parallel", "parallel", "arbitrary")),
    )(q, k, v)


# --------------------------------------------------------------------------
# Kernel 3: out-projection + residual, LN2, FFN (hidden-dim tiled) + residual.
# --------------------------------------------------------------------------
def mlp_kernel(x_ref, attn_ref, wproj_ref, g2_ref, b2_ref, w1_ref, w2_ref,
               o_ref, x1_scr, h2_scr, acc_scr, *, n_heads):
    fi = pl.program_id(2)

    @pl.when(fi == 0)
    def _init():
        # Output projection as a single contraction over (head, head_dim),
        # realized as per-head lane-dense (tq,hd)@(hd,C) matmuls accumulated
        # in fp32 — no (H, tq, C) intermediate, no head-sum on the VPU.
        proj = jnp.dot(attn_ref[0, 0], wproj_ref[0],
                       preferred_element_type=jnp.float32)
        for h in range(1, n_heads):
            proj = proj + jnp.dot(attn_ref[0, h], wproj_ref[h],
                                  preferred_element_type=jnp.float32)
        x1 = x_ref[0] + proj                                    # attn residual
        x1_scr[...] = x1
        h2_scr[...] = _layernorm(x1, g2_ref[0], b2_ref[0]).astype(jnp.bfloat16)
        acc_scr[...] = jnp.zeros_like(acc_scr)

    # FFN tile over the 4C hidden dimension (grid axis 2, "arbitrary").
    f = jnp.maximum(jnp.dot(h2_scr[...], w1_ref[...],
                            preferred_element_type=jnp.float32), 0.0)
    acc_scr[...] += jnp.dot(f.astype(jnp.bfloat16), w2_ref[...],
                            preferred_element_type=jnp.float32)

    @pl.when(fi == pl.num_programs(2) - 1)
    def _finalize():
        o_ref[0] = x1_scr[...] + acc_scr[...]                    # FFN residual


def run_mlp(x, attn, wproj_h, ln2g, ln2b, w1, w2, n_heads, *, tq=None, tf=None):
    B, T, C = x.shape
    H = n_heads
    hd = C // H
    hidden = w1.shape[1]
    tq_t, _ = _attn_tile_targets()
    tq = _pick_tile(T, tq_t, 8) if tq is None else tq
    if tf is None:
        # Keep w1/w2 fully resident (nf == 1, fetched once) while small; tile
        # the hidden dim once they would blow the v7x VMEM budget.
        if (w1.size + w2.size) * 2 <= 24 * 1024 * 1024:
            tf = hidden
        else:
            tf = _pick_tile(hidden, 2048, 128)
    nq, nf = T // tq, hidden // tf
    resident_ffn = nf == 1

    grid_spec = pltpu.PrefetchScalarGridSpec(
        num_scalar_prefetch=0,
        grid=(B, nq, nf),
        in_specs=[
            pl.BlockSpec((1, tq, C), lambda b, qi, fi: (b, qi, 0)),
            pl.BlockSpec((1, H, tq, hd), lambda b, qi, fi: (b, 0, qi, 0)),
            _bspec((H, hd, C), lambda b, qi, fi: (0, 0, 0), single_buffer=True),
            _bspec((1, C), lambda b, qi, fi: (0, 0), single_buffer=True),
            _bspec((1, C), lambda b, qi, fi: (0, 0), single_buffer=True),
            _bspec((C, tf), lambda b, qi, fi: (0, fi), single_buffer=resident_ffn),
            _bspec((tf, C), lambda b, qi, fi: (fi, 0), single_buffer=resident_ffn),
        ],
        out_specs=pl.BlockSpec((1, tq, C), lambda b, qi, fi: (b, qi, 0)),
        scratch_shapes=[
            pltpu.VMEM((tq, C), jnp.float32),   # x + attn-proj residual
            pltpu.VMEM((tq, C), jnp.bfloat16),  # LN2 activation
            pltpu.VMEM((tq, C), jnp.float32),   # FFN accumulator
        ],
    )
    kernel = functools.partial(mlp_kernel, n_heads=H)
    return pl.pallas_call(
        kernel,
        out_shape=jax.ShapeDtypeStruct((B, T, C), jnp.float32),
        grid_spec=grid_spec,
        compiler_params=_compiler_params(("parallel", "parallel", "arbitrary")),
    )(x, attn, wproj_h, ln2g, ln2b, w1, w2)


# --------------------------------------------------------------------------
# Final LayerNorm (bf16 output) + weight-stationary LM head.
# --------------------------------------------------------------------------
def ln_kernel(x_ref, g_ref, b_ref, o_ref):
    o_ref[0] = _layernorm(x_ref[0], g_ref[0], b_ref[0]).astype(o_ref.dtype)


def run_final_ln(x, g, b, *, tq=None):
    B, T, C = x.shape
    tq_t, _ = _attn_tile_targets()
    tq = _pick_tile(T, tq_t, 8) if tq is None else tq
    nq = T // tq
    grid_spec = pltpu.PrefetchScalarGridSpec(
        num_scalar_prefetch=0,
        grid=(B, nq),
        in_specs=[
            pl.BlockSpec((1, tq, C), lambda b, qi: (b, qi, 0)),
            _bspec((1, C), lambda b, qi: (0, 0), single_buffer=True),
            _bspec((1, C), lambda b, qi: (0, 0), single_buffer=True),
        ],
        out_specs=pl.BlockSpec((1, tq, C), lambda b, qi: (b, qi, 0)),
    )
    return pl.pallas_call(
        ln_kernel,
        out_shape=jax.ShapeDtypeStruct((B, T, C), jnp.bfloat16),
        grid_spec=grid_spec,
        compiler_params=_compiler_params(("parallel", "parallel")),
    )(x, g, b)


def head_kernel(x_ref, w_ref, o_ref):
    o_ref[0] = jnp.dot(x_ref[0], w_ref[...], preferred_element_type=jnp.float32)


def run_head(xn, w_head, *, tq=None, tv=None):
    B, T, C = xn.shape
    Vp = w_head.shape[1]                       # already padded to 128 multiple
    tq_t, _ = _attn_tile_targets()
    tq = _pick_tile(T, tq_t, 8) if tq is None else tq
    tv = _pick_tile(Vp, 512, 128) if tv is None else tv
    nq, nv = T // tq, Vp // tv
    # Vocab axis is the SLOWEST grid axis -> each (C, tv) weight tile is
    # fetched once and stays stationary while activation tiles stream.
    grid_spec = pltpu.PrefetchScalarGridSpec(
        num_scalar_prefetch=0,
        grid=(nv, B, nq),
        in_specs=[
            pl.BlockSpec((1, tq, C), lambda vi, b, qi: (b, qi, 0)),
            pl.BlockSpec((C, tv), lambda vi, b, qi: (0, vi)),
        ],
        out_specs=pl.BlockSpec((1, tq, tv), lambda vi, b, qi: (b, qi, vi)),
    )
    return pl.pallas_call(
        head_kernel,
        out_shape=jax.ShapeDtypeStruct((B, T, Vp), jnp.float32),
        grid_spec=grid_spec,
        compiler_params=_compiler_params(("parallel", "parallel", "parallel")),
    )(xn, w_head)


# --------------------------------------------------------------------------
# Parameters (PyTorch layout), one-time kernel-layout prep, forward pass.
# --------------------------------------------------------------------------
def init_params(key, vocab_size, n_embd, block_size, n_layers):
    # Linear weights stored transposed as (in, out) so y = x @ W == x @ W_pt.T
    keys = jax.random.split(key, 3 + n_layers)
    emb = 0.02 * jax.random.normal(keys[0], (vocab_size, n_embd), jnp.float32)
    pos = 0.02 * jax.random.normal(keys[1], (block_size, n_embd), jnp.float32)
    w_head = 0.02 * jax.random.normal(keys[2], (n_embd, vocab_size), jnp.float32)
    layers = []
    for l in range(n_layers):
        k0, k1, k2, k3 = jax.random.split(keys[3 + l], 4)
        wqkv = 0.02 * jax.random.normal(k0, (n_embd, 3 * n_embd), jnp.float32)
        wproj = 0.02 * jax.random.normal(k1, (n_embd, n_embd), jnp.float32)
        w1 = 0.02 * jax.random.normal(k2, (n_embd, 4 * n_embd), jnp.float32)
        w2 = 0.02 * jax.random.normal(k3, (4 * n_embd, n_embd), jnp.float32)
        ln1g = jnp.ones((1, n_embd), jnp.float32)
        ln1b = jnp.zeros((1, n_embd), jnp.float32)
        ln2g = jnp.ones((1, n_embd), jnp.float32)
        ln2b = jnp.zeros((1, n_embd), jnp.float32)
        layers.append((ln1g, ln1b, wqkv, wproj, ln2g, ln2b, w1, w2))
    lng = jnp.ones((1, n_embd), jnp.float32)
    lnb = jnp.zeros((1, n_embd), jnp.float32)
    return emb, pos, layers, lng, lnb, w_head


def prepare_params(params, n_heads):
    """One-time relayout / bf16 cast / scale folding into kernel layout."""
    emb, pos, layers, lng, lnb, w_head = params
    C = emb.shape[1]
    hd = C // n_heads
    scale = 1.0 / math.sqrt(hd)
    prep_layers = []
    for (ln1g, ln1b, wqkv, wproj, ln2g, ln2b, w1, w2) in layers:
        # fold the 1/sqrt(hd) attention scale into the Q projection columns
        wqkv_s = jnp.concatenate([wqkv[:, :C] * scale, wqkv[:, C:]], axis=1)
        prep_layers.append(dict(
            ln1g=ln1g, ln1b=ln1b,
            wqkv=wqkv_s.astype(jnp.bfloat16),                         # (C, 3C)
            wproj=wproj.reshape(n_heads, hd, C).astype(jnp.bfloat16),  # (H,hd,C)
            ln2g=ln2g, ln2b=ln2b,
            w1=w1.astype(jnp.bfloat16), w2=w2.astype(jnp.bfloat16)))
    V = w_head.shape[1]
    Vp = ((V + 127) // 128) * 128          # lane-dense LM-head tiles/stores
    w_head_b = w_head.astype(jnp.bfloat16)
    if Vp != V:
        w_head_b = jnp.pad(w_head_b, ((0, 0), (0, Vp - V)))
    return dict(emb=emb, pos=pos, layers=prep_layers, lng=lng, lnb=lnb,
                w_head=w_head_b, vocab=V)


def abc_transformer_forward(idx, prep, n_heads):
    """idx: (B, T) int32 token ids -> logits (B, T, vocab_size)."""
    B, T = idx.shape
    # Embedding gathers are plain-JAX glue around the kernels.
    x = jnp.take(prep["emb"], idx, axis=0) + prep["pos"][:T][None, :, :]
    for layer in prep["layers"]:
        q, k, v = run_qkv(x, layer["ln1g"], layer["ln1b"], layer["wqkv"], n_heads)
        attn = run_flash(q, k, v)
        x = run_mlp(x, attn, layer["wproj"], layer["ln2g"], layer["ln2b"],
                    layer["w1"], layer["w2"], n_heads)
    xn = run_final_ln(x, prep["lng"], prep["lnb"])
    logits = run_head(xn, prep["w_head"])
    if logits.shape[-1] != prep["vocab"]:
        logits = logits[..., :prep["vocab"]]   # drop vocab padding
    return logits


if __name__ == "__main__":
    vocab_size = 64
    n_embd = 32
    block_size = 16
    n_heads = 4
    n_layers = 2
    B, T = 2, 8

    key = jax.random.PRNGKey(0)
    pkey, dkey = jax.random.split(key)
    params = init_params(pkey, vocab_size, n_embd, block_size, n_layers)
    prep = prepare_params(params, n_heads)
    idx = jax.random.randint(dkey, (B, T), 0, vocab_size, dtype=jnp.int32)

    logits = abc_transformer_forward(idx, prep, n_heads)
    logits = jax.block_until_ready(logits)
    assert logits.shape == (B, T, vocab_size)
    assert bool(jnp.all(jnp.isfinite(logits)))
    print("KERNEL_OK")
</pallas_src>

<mosaic_0001>
module attributes {stable_mosaic.version = 11 : i64} {
  func.func @_probe(%arg0: i32, %arg1: memref<8x128xf32, #tpu.memory_space<vmem>>, %arg2: memref<8x128xf32, #tpu.memory_space<vmem>>) attributes {dimension_semantics = [#tpu.dimension_semantics<arbitrary>], iteration_bounds = array<i64: 2>, scalar_prefetch = 0 : i64, scratch_operands = 0 : i64, tpu.core_type = #tpu.core_type<tc>, window_params = [{pipeline_mode = #tpu.pipeline_mode<synchronous>, transform_indices = @transform_0, window_bounds = array<i64: 8, 128>}, {pipeline_mode = #tpu.pipeline_mode<synchronous>, transform_indices = @transform_1, window_bounds = array<i64: 8, 128>}]} {
    %c0 = arith.constant 0 : index
    %c0_0 = arith.constant 0 : index
    %0 = vector.load %arg1[%c0, %c0_0] : memref<8x128xf32, #tpu.memory_space<vmem>>, vector<8x128xf32>
    %cst = arith.constant 1.000000e+00 : f32
    %1 = vector.broadcast %cst : f32 to vector<8x128xf32>
    %2 = arith.addf %0, %1 : vector<8x128xf32>
    %c0_1 = arith.constant 0 : index
    %c0_2 = arith.constant 0 : index
    %3 = vector.load %arg2[%c0_1, %c0_2] : memref<8x128xf32, #tpu.memory_space<vmem>>, vector<8x128xf32>
    tpu.vector_store %arg2[%c0_1, %c0_2], %2 {strides = array<i32>} : memref<8x128xf32, #tpu.memory_space<vmem>>, vector<8x128xf32>,
    return
  }
  func.func @transform_0(%arg0: i32) -> (i32, i32) {
    %c0_i32 = arith.constant 0 : i32
    %c0_i32_0 = arith.constant 0 : i32
    %c0_i32_1 = arith.constant 0 : i32
    return %c0_i32, %c0_i32_0 : i32, i32
  }
  func.func @transform_1(%arg0: i32) -> (i32, i32) {
    %c0_i32 = arith.constant 0 : i32
    %c0_i32_0 = arith.constant 0 : i32
    %c0_i32_1 = arith.constant 0 : i32
    return %c0_i32, %c0_i32_0 : i32, i32
  }
}

module attributes {stable_mosaic.version = 11 : i64} {
  func.func @qkv_kernel(%arg0: i32, %arg1: i32, %arg2: memref<1x8x32xf32, #tpu.memory_space<vmem>>, %arg3: memref<1x32xf32, #tpu.memory_space<vmem>>, %arg4: memref<1x32xf32, #tpu.memory_space<vmem>>, %arg5: memref<32x96xbf16, #tpu.memory_space<vmem>>, %arg6: memref<1x4x8x8xbf16, #tpu.memory_space<vmem>>, %arg7: memref<1x4x8x8xbf16, #tpu.memory_space<vmem>>, %arg8: memref<1x4x8x8xbf16, #tpu.memory_space<vmem>>) attributes {dimension_semantics = [#tpu.dimension_semantics<parallel>, #tpu.dimension_semantics<parallel>], iteration_bounds = array<i64: 2, 1>, scalar_prefetch = 0 : i64, scratch_operands = 0 : i64, tpu.core_type = #tpu.core_type<tc>, window_params = [{transform_indices = @transform_0, window_bounds = array<i64: 1, 8, 32>}, {pipeline_mode = #tpu.pipeline_mode<synchronous>, transform_indices = @transform_1, window_bounds = array<i64: 1, 32>}, {pipeline_mode = #tpu.pipeline_mode<synchronous>, transform_indices = @transform_2, window_bounds = array<i64: 1, 32>}, {pipeline_mode = #tpu.pipeline_mode<synchronous>, transform_indices = @transform_3, window_bounds = array<i64: 32, 96>}, {transform_indices = @transform_4, window_bounds = array<i64: 1, 4, 8, 8>}, {transform_indices = @transform_5, window_bounds = array<i64: 1, 4, 8, 8>}, {transform_indices = @transform_6, window_bounds = array<i64: 1, 4, 8, 8>}]} {
    %c0 = arith.constant 0 : index
    %c0_0 = arith.constant 0 : index
    %c0_1 = arith.constant 0 : index
    %0 = vector.load %arg2[%c0, %c0_0, %c0_1] : memref<1x8x32xf32, #tpu.memory_space<vmem>>, vector<1x8x32xf32>
    %1 = vector.shape_cast %0 : vector<1x8x32xf32> to vector<8x32xf32>
    %c0_2 = arith.constant 0 : index
    %c0_3 = arith.constant 0 : index
    %2 = vector.load %arg3[%c0_2, %c0_3] : memref<1x32xf32, #tpu.memory_space<vmem>>, vector<1x32xf32>
    %3 = vector.shape_cast %2 : vector<1x32xf32> to vector<32xf32>
    %c0_4 = arith.constant 0 : index
    %c0_5 = arith.constant 0 : index
    %4 = vector.load %arg4[%c0_4, %c0_5] : memref<1x32xf32, #tpu.memory_space<vmem>>, vector<1x32xf32>
    %5 = vector.shape_cast %4 : vector<1x32xf32> to vector<32xf32>
    %cst = arith.constant dense<0.000000e+00> : vector<8xf32>
    %6 = vector.multi_reduction <add>, %1, %cst [1] : vector<8x32xf32> to vector<8xf32>
    %7 = vector.shape_cast %6 : vector<8xf32> to vector<8x1xf32>
    %cst_6 = arith.constant 3.200000e+01 : f32
    %8 = vector.broadcast %cst_6 : f32 to vector<8x1xf32>
    %9 = arith.divf %7, %8 : vector<8x1xf32>
    %10 = vector.broadcast %9 : vector<8x1xf32> to vector<8x32xf32>
    %11 = arith.subf %1, %10 : vector<8x32xf32>
    %12 = arith.mulf %11, %11 : vector<8x32xf32>
    %cst_7 = arith.constant dense<0.000000e+00> : vector<8xf32>
    %13 = vector.multi_reduction <add>, %12, %cst_7 [1] : vector<8x32xf32> to vector<8xf32>
    %14 = vector.shape_cast %13 : vector<8xf32> to vector<8x1xf32>
    %cst_8 = arith.constant 3.200000e+01 : f32
    %15 = vector.broadcast %cst_8 : f32 to vector<8x1xf32>
    %16 = arith.divf %14, %15 : vector<8x1xf32>
    %17 = vector.broadcast %9 : vector<8x1xf32> to vector<8x32xf32>
    %18 = arith.subf %1, %17 : vector<8x32xf32>
    %cst_9 = arith.constant 9.99999974E-6 : f32
    %19 = vector.broadcast %cst_9 : f32 to vector<8x1xf32>
    %20 = arith.addf %16, %19 : vector<8x1xf32>
    %21 = math.rsqrt %20 : vector<8x1xf32>
    %22 = vector.broadcast %21 : vector<8x1xf32> to vector<8x32xf32>
    %23 = arith.mulf %18, %22 : vector<8x32xf32>
    %24 = vector.shape_cast %3 : vector<32xf32> to vector<1x32xf32>
    %25 = vector.broadcast %24 : vector<1x32xf32> to vector<8x32xf32>
    %26 = arith.mulf %23, %25 : vector<8x32xf32>
    %27 = vector.shape_cast %5 : vector<32xf32> to vector<1x32xf32>
    %28 = vector.broadcast %27 : vector<1x32xf32> to vector<8x32xf32>
    %29 = arith.addf %26, %28 : vector<8x32xf32>
    %30 = arith.truncf %29 : vector<8x32xf32> to vector<8x32xbf16>
    %c0_10 = arith.constant 0 : index
    %c0_11 = arith.constant 0 : index
    %31 = vector.load %arg5[%c0_10, %c0_11] : memref<32x96xbf16, #tpu.memory_space<vmem>>, vector<32x96xbf16>
    %cst_12 = arith.constant dense<0.000000e+00> : vector<8x96xf32>
    %32 = tpu.matmul %30, %31, %cst_12 {dimension_numbers = #tpu.dot_dimension_numbers<[1], [0], [0], [1], [0, 0, 1, 1], [], []>} : vector<8x32xbf16>, vector<32x96xbf16>, vector<8x96xf32> -> vector<8x96xf32>
    %33 = arith.truncf %32 : vector<8x96xf32> to vector<8x96xbf16>
    %34 = vector.extract_strided_slice %33 {offsets = [0, 0], sizes = [8, 8], strides = [1, 1]} : vector<8x96xbf16> to vector<8x8xbf16>
    %c0_13 = arith.constant 0 : index
    %c0_14 = arith.constant 0 : index
    %c0_15 = arith.constant 0 : index
    %c0_16 = arith.constant 0 : index
    %35 = vector.load %arg6[%c0_13, %c0_14, %c0_15, %c0_16] : memref<1x4x8x8xbf16, #tpu.memory_space<vmem>>, vector<1x1x8x8xbf16>
    %36 = vector.shape_cast %35 : vector<1x1x8x8xbf16> to vector<8x8xbf16>
    %37 = vector.shape_cast %34 : vector<8x8xbf16> to vector<1x1x8x8xbf16>
    tpu.vector_store %arg6[%c0_13, %c0_14, %c0_15, %c0_16], %37 {strides = array<i32>} : memref<1x4x8x8xbf16, #tpu.memory_space<vmem>>, vector<1x1x8x8xbf16>,
    %38 = vector.extract_strided_slice %33 {offsets = [0, 32], sizes = [8, 8], strides = [1, 1]} : vector<8x96xbf16> to vector<8x8xbf16>
    %c0_17 = arith.constant 0 : index
    %c0_18 = arith.constant 0 : index
    %c0_19 = arith.constant 0 : index
    %c0_20 = arith.constant 0 : index
    %39 = vector.load %arg7[%c0_17, %c0_18, %c0_19, %c0_20] : memref<1x4x8x8xbf16, #tpu.memory_space<vmem>>, vector<1x1x8x8xbf16>
    %40 = vector.shape_cast %39 : vector<1x1x8x8xbf16> to vector<8x8xbf16>
    %41 = vector.shape_cast %38 : vector<8x8xbf16> to vector<1x1x8x8xbf16>
    tpu.vector_store %arg7[%c0_17, %c0_18, %c0_19, %c0_20], %41 {strides = array<i32>} : memref<1x4x8x8xbf16, #tpu.memory_space<vmem>>, vector<1x1x8x8xbf16>,
    %42 = vector.extract_strided_slice %33 {offsets = [0, 64], sizes = [8, 8], strides = [1, 1]} : vector<8x96xbf16> to vector<8x8xbf16>
    %c0_21 = arith.constant 0 : index
    %c0_22 = arith.constant 0 : index
    %c0_23 = arith.constant 0 : index
    %c0_24 = arith.constant 0 : index
    %43 = vector.load %arg8[%c0_21, %c0_22, %c0_23, %c0_24] : memref<1x4x8x8xbf16, #tpu.memory_space<vmem>>, vector<1x1x8x8xbf16>
    %44 = vector.shape_cast %43 : vector<1x1x8x8xbf16> to vector<8x8xbf16>
    %45 = vector.shape_cast %42 : vector<8x8xbf16> to vector<1x1x8x8xbf16>
    tpu.vector_store %arg8[%c0_21, %c0_22, %c0_23, %c0_24], %45 {strides = array<i32>} : memref<1x4x8x8xbf16, #tpu.memory_space<vmem>>, vector<1x1x8x8xbf16>,
    %46 = vector.extract_strided_slice %33 {offsets = [0, 8], sizes = [8, 8], strides = [1, 1]} : vector<8x96xbf16> to vector<8x8xbf16>
    %c0_25 = arith.constant 0 : index
    %c1 = arith.constant 1 : index
    %c0_26 = arith.constant 0 : index
    %c0_27 = arith.constant 0 : index
    %47 = vector.load %arg6[%c0_25, %c1, %c0_26, %c0_27] : memref<1x4x8x8xbf16, #tpu.memory_space<vmem>>, vector<1x1x8x8xbf16>
    %48 = vector.shape_cast %47 : vector<1x1x8x8xbf16> to vector<8x8xbf16>
    %49 = vector.shape_cast %46 : vector<8x8xbf16> to vector<1x1x8x8xbf16>
    tpu.vector_store %arg6[%c0_25, %c1, %c0_26, %c0_27], %49 {strides = array<i32>} : memref<1x4x8x8xbf16, #tpu.memory_space<vmem>>, vector<1x1x8x8xbf16>,
    %50 = vector.extract_strided_slice %33 {offsets = [0, 40], sizes = [8, 8], strides = [1, 1]} : vector<8x96xbf16> to vector<8x8xbf16>
    %c0_28 = arith.constant 0 : index
    %c1_29 = arith.constant 1 : index
    %c0_30 = arith.constant 0 : index
    %c0_31 = arith.constant 0 : index
    %51 = vector.load %arg7[%c0_28, %c1_29, %c0_30, %c0_31] : memref<1x4x8x8xbf16, #tpu.memory_space<vmem>>, vector<1x1x8x8xbf16>
    %52 = vector.shape_cast %51 : vector<1x1x8x8xbf16> to vector<8x8xbf16>
    %53 = vector.shape_cast %50 : vector<8x8xbf16> to vector<1x1x8x8xbf16>
    tpu.vector_store %arg7[%c0_28, %c1_29, %c0_30, %c0_31], %53 {strides = array<i32>} : memref<1x4x8x8xbf16, #tpu.memory_space<vmem>>, vector<1x1x8x8xbf16>,
    %54 = vector.extract_strided_slice %33 {offsets = [0, 72], sizes = [8, 8], strides = [1, 1]} : vector<8x96xbf16> to vector<8x8xbf16>
    %c0_32 = arith.constant 0 : index
    %c1_33 = arith.constant 1 : index
    %c0_34 = arith.constant 0 : index
    %c0_35 = arith.constant 0 : index
    %55 = vector.load %arg8[%c0_32, %c1_33, %c0_34, %c0_35] : memref<1x4x8x8xbf16, #tpu.memory_space<vmem>>, vector<1x1x8x8xbf16>
    %56 = vector.shape_cast %55 : vector<1x1x8x8xbf16> to vector<8x8xbf16>
    %57 = vector.shape_cast %54 : vector<8x8xbf16> to vector<1x1x8x8xbf16>
    tpu.vector_store %arg8[%c0_32, %c1_33, %c0_34, %c0_35], %57 {strides = array<i32>} : memref<1x4x8x8xbf16, #tpu.memory_space<vmem>>, vector<1x1x8x8xbf16>,
    %58 = vector.extract_strided_slice %33 {offsets = [0, 16], sizes = [8, 8], strides = [1, 1]} : vector<8x96xbf16> to vector<8x8xbf16>
    %c0_36 = arith.constant 0 : index
    %c2 = arith.constant 2 : index
    %c0_37 = arith.constant 0 : index
    %c0_38 = arith.constant 0 : index
    %59 = vector.load %arg6[%c0_36, %c2, %c0_37, %c0_38] : memref<1x4x8x8xbf16, #tpu.memory_space<vmem>>, vector<1x1x8x8xbf16>
    %60 = vector.shape_cast %59 : vector<1x1x8x8xbf16> to vector<8x8xbf16>
    %61 = vector.shape_cast %58 : vector<8x8xbf16> to vector<1x1x8x8xbf16>
    tpu.vector_store %arg6[%c0_36, %c2, %c0_37, %c0_38], %61 {strides = array<i32>} : memref<1x4x8x8xbf16, #tpu.memory_space<vmem>>, vector<1x1x8x8xbf16>,
    %62 = vector.extract_strided_slice %33 {offsets = [0, 48], sizes = [8, 8], strides = [1, 1]} : vector<8x96xbf16> to vector<8x8xbf16>
    %c0_39 = arith.constant 0 : index
    %c2_40 = arith.constant 2 : index
    %c0_41 = arith.constant 0 : index
    %c0_42 = arith.constant 0 : index
    %63 = vector.load %arg7[%c0_39, %c2_40, %c0_41, %c0_42] : memref<1x4x8x8xbf16, #tpu.memory_space<vmem>>, vector<1x1x8x8xbf16>
    %64 = vector.shape_cast %63 : vector<1x1x8x8xbf16> to vector<8x8xbf16>
    %65 = vector.shape_cast %62 : vector<8x8xbf16> to vector<1x1x8x8xbf16>
    tpu.vector_store %arg7[%c0_39, %c2_40, %c0_41, %c0_42], %65 {strides = array<i32>} : memref<1x4x8x8xbf16, #tpu.memory_space<vmem>>, vector<1x1x8x8xbf16>,
    %66 = vector.extract_strided_slice %33 {offsets = [0, 80], sizes = [8, 8], strides = [1, 1]} : vector<8x96xbf16> to vector<8x8xbf16>
    %c0_43 = arith.constant 0 : index
    %c2_44 = arith.constant 2 : index
    %c0_45 = arith.constant 0 : index
    %c0_46 = arith.constant 0 : index
    %67 = vector.load %arg8[%c0_43, %c2_44, %c0_45, %c0_46] : memref<1x4x8x8xbf16, #tpu.memory_space<vmem>>, vector<1x1x8x8xbf16>
    %68 = vector.shape_cast %67 : vector<1x1x8x8xbf16> to vector<8x8xbf16>
    %69 = vector.shape_cast %66 : vector<8x8xbf16> to vector<1x1x8x8xbf16>
    tpu.vector_store %arg8[%c0_43, %c2_44, %c0_45, %c0_46], %69 {strides = array<i32>} : memref<1x4x8x8xbf16, #tpu.memory_space<vmem>>, vector<1x1x8x8xbf16>,
    %70 = vector.extract_strided_slice %33 {offsets = [0, 24], sizes = [8, 8], strides = [1, 1]} : vector<8x96xbf16> to vector<8x8xbf16>
    %c0_47 = arith.constant 0 : index
    %c3 = arith.constant 3 : index
    %c0_48 = arith.constant 0 : index
    %c0_49 = arith.constant 0 : index
    %71 = vector.load %arg6[%c0_47, %c3, %c0_48, %c0_49] : memref<1x4x8x8xbf16, #tpu.memory_space<vmem>>, vector<1x1x8x8xbf16>
    %72 = vector.shape_cast %71 : vector<1x1x8x8xbf16> to vector<8x8xbf16>
    %73 = vector.shape_cast %70 : vector<8x8xbf16> to vector<1x1x8x8xbf16>
    tpu.vector_store %arg6[%c0_47, %c3, %c0_48, %c0_49], %73 {strides = array<i32>} : memref<1x4x8x8xbf16, #tpu.memory_space<vmem>>, vector<1x1x8x8xbf16>,
    %74 = vector.extract_strided_slice %33 {offsets = [0, 56], sizes = [8, 8], strides = [1, 1]} : vector<8x96xbf16> to vector<8x8xbf16>
    %c0_50 = arith.constant 0 : index
    %c3_51 = arith.constant 3 : index
    %c0_52 = arith.constant 0 : index
    %c0_53 = arith.constant 0 : index
    %75 = vector.load %arg7[%c0_50, %c3_51, %c0_52, %c0_53] : memref<1x4x8x8xbf16, #tpu.memory_space<vmem>>, vector<1x1x8x8xbf16>
    %76 = vector.shape_cast %75 : vector<1x1x8x8xbf16> to vector<8x8xbf16>
    %77 = vector.shape_cast %74 : vector<8x8xbf16> to vector<1x1x8x8xbf16>
    tpu.vector_store %arg7[%c0_50, %c3_51, %c0_52, %c0_53], %77 {strides = array<i32>} : memref<1x4x8x8xbf16, #tpu.memory_space<vmem>>, vector<1x1x8x8xbf16>,
    %78 = vector.extract_strided_slice %33 {offsets = [0, 88], sizes = [8, 8], strides = [1, 1]} : vector<8x96xbf16> to vector<8x8xbf16>
    %c0_54 = arith.constant 0 : index
    %c3_55 = arith.constant 3 : index
    %c0_56 = arith.constant 0 : index
    %c0_57 = arith.constant 0 : index
    %79 = vector.load %arg8[%c0_54, %c3_55, %c0_56, %c0_57] : memref<1x4x8x8xbf16, #tpu.memory_space<vmem>>, vector<1x1x8x8xbf16>
    %80 = vector.shape_cast %79 : vector<1x1x8x8xbf16> to vector<8x8xbf16>
    %81 = vector.shape_cast %78 : vector<8x8xbf16> to vector<1x1x8x8xbf16>
    tpu.vector_store %arg8[%c0_54, %c3_55, %c0_56, %c0_57], %81 {strides = array<i32>} : memref<1x4x8x8xbf16, #tpu.memory_space<vmem>>, vector<1x1x8x8xbf16>,
    return
  }
  func.func @transform_0(%arg0: i32, %arg1: i32) -> (i32, i32, i32) {
    %c0_i32 = arith.constant 0 : i32
    %c0_i32_0 = arith.constant 0 : i32
    return %arg0, %arg1, %c0_i32 : i32, i32, i32
  }
  func.func @transform_1(%arg0: i32, %arg1: i32) -> (i32, i32) {
    %c0_i32 = arith.constant 0 : i32
    %c0_i32_0 = arith.constant 0 : i32
    %c0_i32_1 = arith.constant 0 : i32
    return %c0_i32, %c0_i32_0 : i32, i32
  }
  func.func @transform_2(%arg0: i32, %arg1: i32) -> (i32, i32) {
    %c0_i32 = arith.constant 0 : i32
    %c0_i32_0 = arith.constant 0 : i32
    %c0_i32_1 = arith.constant 0 : i32
    return %c0_i32, %c0_i32_0 : i32, i32
  }
  func.func @transform_3(%arg0: i32, %arg1: i32) -> (i32, i32) {
    %c0_i32 = arith.constant 0 : i32
    %c0_i32_0 = arith.constant 0 : i32
    %c0_i32_1 = arith.constant 0 : i32
    return %c0_i32, %c0_i32_0 : i32, i32
  }
  func.func @transform_4(%arg0: i32, %arg1: i32) -> (i32, i32, i32, i32) {
    %c0_i32 = arith.constant 0 : i32
    %c0_i32_0 = arith.constant 0 : i32
    %c0_i32_1 = arith.constant 0 : i32
    return %arg0, %c0_i32, %arg1, %c0_i32_0 : i32, i32, i32, i32
  }
  func.func @transform_5(%arg0: i32, %arg1: i32) -> (i32, i32, i32, i32) {
    %c0_i32 = arith.constant 0 : i32
    %c0_i32_0 = arith.constant 0 : i32
    %c0_i32_1 = arith.constant 0 : i32
    return %arg0, %c0_i32, %arg1, %c0_i32_0 : i32, i32, i32, i32
  }
  func.func @transform_6(%arg0: i32, %arg1: i32) -> (i32, i32, i32, i32) {
    %c0_i32 = arith.constant 0 : i32
    %c0_i32_0 = arith.constant 0 : i32
    %c0_i32_1 = arith.constant 0 : i32
    return %arg0, %c0_i32, %arg1, %c0_i32_0 : i32, i32, i32, i32
  }
}

</mosaic_0001>

<llo_original>
// kernel: tpu_custom_call.1
$region0: #{tpu_custom_call.1}
  #allocation0 [shape = 'u32[]', space=smem, size = 0x4, offset = 0x4, fixed_abs, tag = 'smem constant byte address 0x4 - core index']
  #allocation1 [shape = 'u32[72,128]{1,0:T(1,128)}', space=vmem, size = 0x9000, scoped, tag = 'internal scratch']
  %s0 = inlined_call_operand.hbm [shape: f32[8,128], index: 0, kind: input, shape index: {}]
  %s1 = inlined_call_operand.hbm [shape: f32[8,128], index: 1, kind: output, shape index: {}]
  %s2 = sld [smem:[#allocation0]]
  $region41: #{tpu_custom_call.1} parent=0
    _
  %s4 = ssub.s32 1, %s2
  %s5 = scalar_select 0, %s4, %s2
  $region1: #{tpu_custom_call.1} parent=0
    #allocation2 [shape = 'u8[4096]{0}', space=vmem, size = 0x1000, scoped, tag = 'input window, operand 0, single buffered']
    #allocation3 [shape = 's32[2]{0}', space=sflag, size = 0x8, scoped, tag = 'scoped memory for tpu_custom_call.1']
    #allocation4 [shape = 's32[2]{0}', space=sflag, size = 0x8, scoped, tag = 'scoped memory for tpu_custom_call.1']
    #allocation5 [shape = 'u8[4096]{0}', space=vmem, size = 0x1000, scoped, tag = 'output window, operand 0, single buffered']
    %6 = vsyncpa [#allocation3], 0
    %7 = vsyncpa [#allocation4], 0
    loop: start=0, step=1, limit=4
    $region2: #{tpu_custom_call.1} parent=1 // loop_pre_header
      _
    $region3: #{tpu_custom_call.1} parent=1 // loop_header
      %s9 = sphi 0, %s13
      %p10 = scmp.ge.s32.totalorder %s9, 4
      %s17 = sphi 0, %s17
      %s19 = sphi 0, %s17
      %s20 = sphi 0, %s19
      %s34 = sphi 0, %s20
      %s38 = sphi 0, %s38
      %s40 = sphi 0, %s38
      %s41 = sphi 0, %s40
      %s55 = sphi 0, %s41
    $region4: #{tpu_custom_call.1} parent=1 // loop_header_branch
      %12 = sbr.rel (%p10) target = $region8
    $region5: #{tpu_custom_call.1} parent=1 // loop_body
      %s14 = ssub.s32 %s9, 1
      %s15 = ssub.s32 %s9, 2
      %s16 = sadd.s32 %s9, 1
      %s18 = sadd.s32 %s17, 1
      %p21 = scmp.eq.s32.totalorder %s9, 1
      %p22 = scmp.ne.s32.totalorder %s17, %s19
      %p23 = scmp.eq.s32.totalorder %s9, 0
      %p24 = por %p22, %p23
      %p25 = scmp.ne.s32.totalorder %s17, %s19
      %p26 = scmp.eq.s32.totalorder %s14, 1
      %p27 = por %p25, %p26
      %p28 = scmp.ne.s32.totalorder %s19, %s20
      %p29 = scmp.eq.s32.totalorder %s14, 0
      %p30 = por %p28, %p29
      %p31 = scmp.ne.s32.totalorder %s19, %s20
      %p32 = scmp.eq.s32.totalorder %s15, 1
      %p33 = por %p31, %p32
      %p35 = scmp.ne.s32.totalorder %s20, %s34
      %p36 = scmp.eq.s32.totalorder %s15, 0
      %p37 = por %p35, %p36
      %s39 = sadd.s32 %s38, 1
      %p42 = scmp.eq.s32.totalorder %s9, 1
      %p43 = scmp.ne.s32.totalorder %s38, %s40
      %p44 = scmp.eq.s32.totalorder %s9, 0
      %p45 = por %p43, %p44
      %p46 = scmp.ne.s32.totalorder %s38, %s40
      %p47 = scmp.eq.s32.totalorder %s14, 1
      %p48 = por %p46, %p47
      %p49 = scmp.ne.s32.totalorder %s40, %s41
      %p50 = scmp.eq.s32.totalorder %s14, 0
      %p51 = por %p49, %p50
      %p52 = scmp.ne.s32.totalorder %s40, %s41
      %p53 = scmp.eq.s32.totalorder %s15, 1
      %p54 = por %p52, %p53
      %p56 = scmp.ne.s32.totalorder %s41, %s55
      %p57 = scmp.eq.s32.totalorder %s15, 0
      %p58 = por %p56, %p57
      %p59 = scmp.le.s32.totalorder 1, %s9
      %p60 = scmp.lt.s32.totalorder %s9, 3
      %p61 = pnand %p59, %p60
      %p62 = pneg %p61
      // Predicated region
      $region9: #{tpu_custom_call.1} parent=5 // pred_check
        _
      $region10: #{tpu_custom_call.1} parent=5 // pred_check_branch
        %64 = sbr.rel (%p61) target = $region12
      $region11: #{tpu_custom_call.1} parent=5 // pred_region
        %s65 = ssub.s32 %s9, 1
        // Predicated region
        $region13: #{tpu_custom_call.1} parent=11 // pred_check
          %p66 = pneg %p30
        $region14: #{tpu_custom_call.1} parent=11 // pred_check_branch
          %68 = sbr.rel (%p66) target = $region16
        $region15: #{tpu_custom_call.1} parent=11 // pred_region
          %70 = vsyncadd [#allocation3], 0
          %s72 = sshll.u32 %s0, 4
          %s73 = int_to_ptr.hbm [resolvable:$true] %s72
          %s74 = sshll.u32 [#allocation2], 4
          %s75 = int_to_ptr.vmem [resolvable:$true] %s74
          %77 = dma.hbm_to_vmem [thread:$0]  %s73, 128, %s75, [#allocation3]
        $region16: #{tpu_custom_call.1} parent=11 // pred_fallthru
          _
      $region12: #{tpu_custom_call.1} parent=5 // pred_fallthru
        _
      %p78 = scmp.lt.s32.totalorder %s9, 2
      // Predicated region
      $region17: #{tpu_custom_call.1} parent=5 // pred_check
        %p79 = pneg %p78
      $region18: #{tpu_custom_call.1} parent=5 // pred_check_branch
        %81 = sbr.rel (%p79) target = $region20
      $region19: #{tpu_custom_call.1} parent=5 // pred_region
        _
      $region20: #{tpu_custom_call.1} parent=5 // pred_fallthru
        _
      %p82 = scmp.le.s32.totalorder 1, %s9
      %p83 = scmp.lt.s32.totalorder %s9, 3
      %p84 = pnand %p82, %p83
      %p85 = pneg %p84
      // Predicated region
      $region21: #{tpu_custom_call.1} parent=5 // pred_check
        _
      $region22: #{tpu_custom_call.1} parent=5 // pred_check_branch
        %87 = sbr.rel (%p84) target = $region24
      $region23: #{tpu_custom_call.1} parent=5 // pred_region
        %s88 = ssub.s32 %s9, 1
        // Predicated region
        $region25: #{tpu_custom_call.1} parent=23 // pred_check
          %p89 = pneg %p30
        $region26: #{tpu_custom_call.1} parent=23 // pred_check_branch
          %91 = sbr.rel (%p89) target = $region28
        $region27: #{tpu_custom_call.1} parent=23 // pred_region
          %93 = dma.done [#allocation3], 128
        $region28: #{tpu_custom_call.1} parent=23 // pred_fallthru
          _
        %p94 = pneg %p30
        %p95 = pneg %p27
        %p96 = pneg %p51
        %p97 = pneg %p48
        %v98 = vld [vmem:[#allocation2] sm:$0xff]
        %v99 = vadd.f32 %v98, 1.0
        %100 = vst [vmem:[#allocation5] sm:$0xff] %v99
        // Predicated region
        $region29: #{tpu_custom_call.1} parent=23 // pred_check
          %p101 = pneg %p48
        $region30: #{tpu_custom_call.1} parent=23 // pred_check_branch
          %103 = sbr.rel (%p101) target = $region32
        $region31: #{tpu_custom_call.1} parent=23 // pred_region
          %105 = vsyncadd [#allocation4], 0
          %s107 = sshll.u32 [#allocation5], 4
          %s108 = int_to_ptr.vmem [resolvable:$true] %s107
          %s109 = sshll.u32 %s1, 4
          %s110 = int_to_ptr.hbm [resolvable:$true] %s109
          %112 = dma.vmem_to_hbm [thread:$0]  %s108, 128, %s110, [#allocation4]
        $region32: #{tpu_custom_call.1} parent=23 // pred_fallthru
          _
        // Predicated region
        $region33: #{tpu_custom_call.1} parent=23 // pred_check
          %p113 = pneg %p48
        $region34: #{tpu_custom_call.1} parent=23 // pred_check_branch
          %115 = sbr.rel (%p113) target = $region36
        $region35: #{tpu_custom_call.1} parent=23 // pred_region
          %117 = dma.done [#allocation4], 128
        $region36: #{tpu_custom_call.1} parent=23 // pred_fallthru
          _
      $region24: #{tpu_custom_call.1} parent=5 // pred_fallthru
        _
      %p118 = scmp.le.s32.totalorder 2, %s9
      // Predicated region
      $region37: #{tpu_custom_call.1} parent=5 // pred_check
        %p119 = pneg %p118
      $region38: #{tpu_custom_call.1} parent=5 // pred_check_branch
        %121 = sbr.rel (%p119) target = $region40
      $region39: #{tpu_custom_call.1} parent=5 // pred_region
        %s122 = ssub.s32 %s9, 2
      $region40: #{tpu_custom_call.1} parent=5 // pred_fallthru
        _
    $region6: #{tpu_custom_call.1} parent=1 // loop_footer
      %s13 = sadd.s32 1, %s9
    $region7: #{tpu_custom_call.1} parent=1 // loop_footer_branch
      %8 = sbr.rel target = $region3
    $region8: #{tpu_custom_call.1} parent=1 // loop_exit
      _
    %123 = vsyncpa [#allocation3], 1
    %s124 = scalar_lea.sflag [#allocation3], 1
    %125 = vsyncpa %s124, 1
    %126 = vsyncpa [#allocation4], 1
    %s127 = scalar_lea.sflag [#allocation4], 1
    %128 = vsyncpa %s127, 1

// kernel: tpu_custom_call.1
$region0: #{tpu_custom_call.1}
  #allocation0 [shape = 'u32[]', space=smem, size = 0x4, offset = 0x4, fixed_abs, tag = 'smem constant byte address 0x4 - core index']
  #allocation1 [shape = 'u32[72,128]{1,0:T(1,128)}', space=vmem, size = 0x9000, scoped, tag = 'internal scratch']
  %s0 = inlined_call_operand.hbm [shape: f32[2,8,32], index: 0, kind: input, shape index: {}]
  %s1 = inlined_call_operand.hbm [shape: f32[1,32], index: 1, kind: input, shape index: {}]
  %s2 = inlined_call_operand.vmem [shape: f32[1,32], index: 2, kind: input, shape index: {}]
  %s3 = inlined_call_operand.hbm [shape: bf16[32,96], index: 3, kind: input, shape index: {}]
  %s4 = inlined_call_operand.hbm [shape: bf16[2,4,8,8], index: 4, kind: output, shape index: {0}]
  %s5 = inlined_call_operand.hbm [shape: bf16[2,4,8,8], index: 5, kind: output, shape index: {1}]
  %s6 = inlined_call_operand.hbm [shape: bf16[2,4,8,8], index: 6, kind: output, shape index: {2}]
  %7 = xla_tuple %s4, %s5, %s6
  %s8 = sld [smem:[#allocation0]]
  $region77: #{tpu_custom_call.1} parent=0
    _
  %s10 = ssub.s32 1, %s8
  %s11 = scalar_select 0, %s10, %s8
  $region1: #{tpu_custom_call.1} parent=0
    #allocation2 [shape = 'u8[8192]{0}', space=vmem, size = 0x2000, scoped, tag = 'input window, operand 0']
    #allocation3 [shape = 's32[2]{0}', space=sflag, size = 0x8, scoped, tag = 'scoped memory for tpu_custom_call.1']
    #allocation4 [shape = 's32[2]{0}', space=sflag, size = 0x8, scoped, tag = 'scoped memory for tpu_custom_call.1']
    #allocation5 [shape = 'u8[512]{0}', space=vmem, size = 0x400, scoped, tag = 'input window, operand 1, single buffered']
    #allocation6 [shape = 's32[1]{0}', space=sflag, size = 0x4, scoped, tag = 'scoped memory for tpu_custom_call.1']
    #allocation7 [shape = 'u8[8192]{0}', space=vmem, size = 0x2000, scoped, tag = 'input window, operand 3, single buffered']
    #allocation8 [shape = 'u8[16384]{0}', space=vmem, size = 0x4000, scoped, tag = 'output window, operand 0']
    #allocation9 [shape = 'u8[16384]{0}', space=vmem, size = 0x4000, scoped, tag = 'output window, operand 1']
    #allocation10 [shape = 's32[2]{0}', space=sflag, size = 0x8, scoped, tag = 'scoped memory for tpu_custom_call.1']
    #allocation11 [shape = 'u8[16384]{0}', space=vmem, size = 0x4000, scoped, tag = 'output window, operand 2']
    %12 = vsyncpa [#allocation3], 0
    %s13 = scalar_lea.sflag [#allocation3], 1
    %14 = vsyncpa %s13, 0
    %15 = vsyncpa [#allocation6], 0
    %16 = vsyncpa [#allocation4], 0
    %s17 = scalar_lea.sflag [#allocation4], 1
    %18 = vsyncpa %s17, 0
    %19 = vsyncpa [#allocation10], 0
    %s20 = scalar_lea.sflag [#allocation10], 1
    %21 = vsyncpa %s20, 0
    loop: start=0, step=1, limit=4
    $region2: #{tpu_custom_call.1} parent=1 // loop_pre_header
      _
    $region3: #{tpu_custom_call.1} parent=1 // loop_header
      %s23 = sphi 0, %s27
      %p24 = scmp.ge.s32.totalorder %s23, 4
      %s30 = sphi 0, %s42
      %s31 = sphi 0, %s38
      %s32 = sphi 0, %s30
      %s33 = sphi 0, %s31
      %s34 = sphi 0, %s32
      %s35 = sphi 0, %s33
      %s47 = sphi 0, %s49
      %s50 = sphi 0, %s47
      %s51 = sphi 0, %s50
      %s67 = sphi 0, %s51
      %s71 = sphi 0, %s71
      %s73 = sphi 0, %s71
      %s74 = sphi 0, %s73
      %s88 = sphi 0, %s74
      %s92 = sphi 0, %s92
      %s94 = sphi 0, %s92
      %s95 = sphi 0, %s94
      %s109 = sphi 0, %s95
      %s113 = sphi 0, %s113
      %s115 = sphi 0, %s113
      %s116 = sphi 0, %s115
      %s130 = sphi 0, %s116
      %s138 = sphi 0, %s140
      %s141 = sphi 0, %s138
      %s142 = sphi 0, %s141
      %s158 = sphi 0, %s142
      %s166 = sphi 0, %s168
      %s169 = sphi 0, %s166
      %s170 = sphi 0, %s169
      %s186 = sphi 0, %s170
      %s194 = sphi 0, %s196
      %s197 = sphi 0, %s194
      %s198 = sphi 0, %s197
      %s214 = sphi 0, %s198
    $region4: #{tpu_custom_call.1} parent=1 // loop_header_branch
      %26 = sbr.rel (%p24) target = $region8
    $region5: #{tpu_custom_call.1} parent=1 // loop_body
      %s28 = ssub.s32 %s23, 1
      %s29 = ssub.s32 %s23, 2
      %s36 = sadd.s32 1, %s31
      %p37 = scmp.ge.s32.totalorder %s36, 1
      %s38 = scalar_select %p37, 0, %s36
      %s39 = sadd.s32 1, %s30
      %s40 = scalar_select %p37, %s39, %s30
      %p41 = scmp.ge.s32.totalorder %s40, 2
      %s42 = scalar_select %p41, 0, %s40
      %s43 = ssub.s32 %s30, %s42
      %s44 = ssub.s32 %s31, %s38
      %s45 = sor.u32 %s43, %s44
      %p46 = scmp.eq.s32.totalorder %s45, 0
      %s48 = sadd.s32 %s47, 1
      %s49 = scalar_select %p46, %s47, %s48
      %p52 = pneg %p46
      %p53 = scmp.eq.s32.totalorder %s23, 1
      %p54 = por %p52, %p53
      %p55 = scmp.ne.s32.totalorder %s47, %s50
      %p56 = scmp.eq.s32.totalorder %s23, 0
      %p57 = por %p55, %p56
      %p58 = scmp.ne.s32.totalorder %s47, %s50
      %p59 = scmp.eq.s32.totalorder %s28, 1
      %p60 = por %p58, %p59
      %p61 = scmp.ne.s32.totalorder %s50, %s51
      %p62 = scmp.eq.s32.totalorder %s28, 0
      %p63 = por %p61, %p62
      %p64 = scmp.ne.s32.totalorder %s50, %s51
      %p65 = scmp.eq.s32.totalorder %s29, 1
      %p66 = por %p64, %p65
      %p68 = scmp.ne.s32.totalorder %s51, %s67
      %p69 = scmp.eq.s32.totalorder %s29, 0
      %p70 = por %p68, %p69
      %s72 = sadd.s32 %s71, 1
      %p75 = scmp.eq.s32.totalorder %s23, 1
      %p76 = scmp.ne.s32.totalorder %s71, %s73
      %p77 = scmp.eq.s32.totalorder %s23, 0
      %p78 = por %p76, %p77
      %p79 = scmp.ne.s32.totalorder %s71, %s73
      %p80 = scmp.eq.s32.totalorder %s28, 1
      %p81 = por %p79, %p80
      %p82 = scmp.ne.s32.totalorder %s73, %s74
      %p83 = scmp.eq.s32.totalorder %s28, 0
      %p84 = por %p82, %p83
      %p85 = scmp.ne.s32.totalorder %s73, %s74
      %p86 = scmp.eq.s32.totalorder %s29, 1
      %p87 = por %p85, %p86
      %p89 = scmp.ne.s32.totalorder %s74, %s88
      %p90 = scmp.eq.s32.totalorder %s29, 0
      %p91 = por %p89, %p90
      %s93 = sadd.s32 %s92, 1
      %p96 = scmp.eq.s32.totalorder %s23, 1
      %p97 = scmp.ne.s32.totalorder %s92, %s94
      %p98 = scmp.eq.s32.totalorder %s23, 0
      %p99 = por %p97, %p98
      %p100 = scmp.ne.s32.totalorder %s92, %s94
      %p101 = scmp.eq.s32.totalorder %s28, 1
      %p102 = por %p100, %p101
      %p103 = scmp.ne.s32.totalorder %s94, %s95
      %p104 = scmp.eq.s32.totalorder %s28, 0
      %p105 = por %p103, %p104
      %p106 = scmp.ne.s32.totalorder %s94, %s95
      %p107 = scmp.eq.s32.totalorder %s29, 1
      %p108 = por %p106, %p107
      %p110 = scmp.ne.s32.totalorder %s95, %s109
      %p111 = scmp.eq.s32.totalorder %s29, 0
      %p112 = por %p110, %p111
      %s114 = sadd.s32 %s113, 1
      %p117 = scmp.eq.s32.totalorder %s23, 1
      %p118 = scmp.ne.s32.totalorder %s113, %s115
      %p119 = scmp.eq.s32.totalorder %s23, 0
      %p120 = por %p118, %p119
      %p121 = scmp.ne.s32.totalorder %s113, %s115
      %p122 = scmp.eq.s32.totalorder %s28, 1
      %p123 = por %p121, %p122
      %p124 = scmp.ne.s32.totalorder %s115, %s116
      %p125 = scmp.eq.s32.totalorder %s28, 0
      %p126 = por %p124, %p125
      %p127 = scmp.ne.s32.totalorder %s115, %s116
      %p128 = scmp.eq.s32.totalorder %s29, 1
      %p129 = por %p127, %p128
      %p131 = scmp.ne.s32.totalorder %s116, %s130
      %p132 = scmp.eq.s32.totalorder %s29, 0
      %p133 = por %p131, %p132
      %s134 = ssub.s32 %s30, %s42
      %s135 = ssub.s32 %s31, %s38
      %s136 = sor.u32 %s134, %s135
      %p137 = scmp.eq.s32.totalorder %s136, 0
      %s139 = sadd.s32 %s138, 1
      %s140 = scalar_select %p137, %s138, %s139
      %p143 = pneg %p137
      %p144 = scmp.eq.s32.totalorder %s23, 1
      %p145 = por %p143, %p144
      %p146 = scmp.ne.s32.totalorder %s138, %s141
      %p147 = scmp.eq.s32.totalorder %s23, 0
      %p148 = por %p146, %p147
      %p149 = scmp.ne.s32.totalorder %s138, %s141
      %p150 = scmp.eq.s32.totalorder %s28, 1
      %p151 = por %p149, %p150
      %p152 = scmp.ne.s32.totalorder %s141, %s142
      %p153 = scmp.eq.s32.totalorder %s28, 0
      %p154 = por %p152, %p153
      %p155 = scmp.ne.s32.totalorder %s141, %s142
      %p156 = scmp.eq.s32.totalorder %s29, 1
      %p157 = por %p155, %p156
      %p159 = scmp.ne.s32.totalorder %s142, %s158
      %p160 = scmp.eq.s32.totalorder %s29, 0
      %p161 = por %p159, %p160
      %s162 = ssub.s32 %s30, %s42
      %s163 = ssub.s32 %s31, %s38
      %s164 = sor.u32 %s162, %s163
      %p165 = scmp.eq.s32.totalorder %s164, 0
      %s167 = sadd.s32 %s166, 1
      %s168 = scalar_select %p165, %s166, %s167
      %p171 = pneg %p165
      %p172 = scmp.eq.s32.totalorder %s23, 1
      %p173 = por %p171, %p172
      %p174 = scmp.ne.s32.totalorder %s166, %s169
      %p175 = scmp.eq.s32.totalorder %s23, 0
      %p176 = por %p174, %p175
      %p177 = scmp.ne.s32.totalorder %s166, %s169
      %p178 = scmp.eq.s32.totalorder %s28, 1
      %p179 = por %p177, %p178
      %p180 = scmp.ne.s32.totalorder %s169, %s170
      %p181 = scmp.eq.s32.totalorder %s28, 0
      %p182 = por %p180, %p181
      %p183 = scmp.ne.s32.totalorder %s169, %s170
      %p184 = scmp.eq.s32.totalorder %s29, 1
      %p185 = por %p183, %p184
      %p187 = scmp.ne.s32.totalorder %s170, %s186
      %p188 = scmp.eq.s32.totalorder %s29, 0
      %p189 = por %p187, %p188
      %s190 = ssub.s32 %s30, %s42
      %s191 = ssub.s32 %s31, %s38
      %s192 = sor.u32 %s190, %s191
      %p193 = scmp.eq.s32.totalorder %s192, 0
      %s195 = sadd.s32 %s194, 1
      %s196 = scalar_select %p193, %s194, %s195
      %p199 = pneg %p193
      %p200 = scmp.eq.s32.totalorder %s23, 1
      %p201 = por %p199, %p200
      %p202 = scmp.ne.s32.totalorder %s194, %s197
      %p203 = scmp.eq.s32.totalorder %s23, 0
      %p204 = por %p202, %p203
      %p205 = scmp.ne.s32.totalorder %s194, %s197
      %p206 = scmp.eq.s32.totalorder %s28, 1
      %p207 = por %p205, %p206
      %p208 = scmp.ne.s32.totalorder %s197, %s198
      %p209 = scmp.eq.s32.totalorder %s28, 0
      %p210 = por %p208, %p209
      %p211 = scmp.ne.s32.totalorder %s197, %s198
      %p212 = scmp.eq.s32.totalorder %s29, 1
      %p213 = por %p211, %p212
      %p215 = scmp.ne.s32.totalorder %s198, %s214
      %p216 = scmp.eq.s32.totalorder %s29, 0
      %p217 = por %p215, %p216
      %p218 = scmp.le.s32.totalorder 1, %s23
      %p219 = scmp.lt.s32.totalorder %s23, 3
      %p220 = pnand %p218, %p219
      %p221 = pneg %p220
      // Predicated region
      $region9: #{tpu_custom_call.1} parent=5 // pred_check
        _
      $region10: #{tpu_custom_call.1} parent=5 // pred_check_branch
        %223 = sbr.rel (%p220) target = $region12
      $region11: #{tpu_custom_call.1} parent=5 // pred_region
        %s224 = ssub.s32 %s23, 1
        // Predicated region
        $region13: #{tpu_custom_call.1} parent=11 // pred_check
          %p225 = pneg %p84
        $region14: #{tpu_custom_call.1} parent=11 // pred_check_branch
          %227 = sbr.rel (%p225) target = $region16
        $region15: #{tpu_custom_call.1} parent=11 // pred_region
          %229 = vsyncadd [#allocation6], 0
          %s231 = sshll.u32 %s1, 4
          %s232 = int_to_ptr.hbm [resolvable:$true] %s231
          %s233 = sshll.u32 [#allocation5], 4
          %s234 = int_to_ptr.vmem [resolvable:$true] %s233
          %236 = dma.hbm_to_vmem [thread:$0]  %s232, 16, %s234, [#allocation6]
        $region16: #{tpu_custom_call.1} parent=11 // pred_fallthru
          _
        // Predicated region
        $region17: #{tpu_custom_call.1} parent=11 // pred_check
          %p237 = pneg %p105
        $region18: #{tpu_custom_call.1} parent=11 // pred_check_branch
          %239 = sbr.rel (%p237) target = $region20
        $region19: #{tpu_custom_call.1} parent=11 // pred_region
          _
        $region20: #{tpu_custom_call.1} parent=11 // pred_fallthru
          _
        // Predicated region
        $region21: #{tpu_custom_call.1} parent=11 // pred_check
          %p240 = pneg %p126
        $region22: #{tpu_custom_call.1} parent=11 // pred_check_branch
          %242 = sbr.rel (%p240) target = $region24
        $region23: #{tpu_custom_call.1} parent=11 // pred_region
          %244 = vsyncadd [#allocation6], 0
          %s245 = sshll.u32 %s3, 4
          %s246 = int_to_ptr.hbm [resolvable:$true] %s245
          %s247 = sshll.u32 [#allocation7], 4
          %s248 = int_to_ptr.vmem [resolvable:$true] %s247
          %253 = dma.hbm_to_vmem [thread:$0]  %s246, 256, %s248, [#allocation6], 64, 64, 4
        $region24: #{tpu_custom_call.1} parent=11 // pred_fallthru
          _
      $region12: #{tpu_custom_call.1} parent=5 // pred_fallthru
        _
      %p254 = scmp.lt.s32.totalorder %s23, 2
      // Predicated region
      $region25: #{tpu_custom_call.1} parent=5 // pred_check
        %p255 = pneg %p254
      $region26: #{tpu_custom_call.1} parent=5 // pred_check_branch
        %257 = sbr.rel (%p255) target = $region28
      $region27: #{tpu_custom_call.1} parent=5 // pred_region
        // Predicated region
        $region29: #{tpu_custom_call.1} parent=27 // pred_check
          %p258 = pneg %p57
        $region30: #{tpu_custom_call.1} parent=27 // pred_check_branch
          %260 = sbr.rel (%p258) target = $region32
        $region31: #{tpu_custom_call.1} parent=27 // pred_region
          %s261 = sand.u32 %s47, 1
          %s262 = scalar_lea.sflag [#allocation3], %s261
          %s263 = sand.u32 %s47, 1
          %s264 = smul.addr %s263, 8
          %s265 = scalar_lea.vmem [#allocation2], %s264
          %267 = vsyncadd %s262, 0
          %s268 = sadd.s32 %s31, %s30
          %s269 = smul.addr %s268, 8
          %s270 = scalar_lea.hbm %s0, %s269
          %s272 = sshll.u32 %s270, 4
          %s273 = int_to_ptr.hbm [resolvable:$true] %s272
          %s274 = sshll.u32 %s265, 4
          %s275 = int_to_ptr.vmem [resolvable:$true] %s274
          %277 = dma.hbm_to_vmem [thread:$0]  %s273, 128, %s275, %s262
        $region32: #{tpu_custom_call.1} parent=27 // pred_fallthru
          _
      $region28: #{tpu_custom_call.1} parent=5 // pred_fallthru
        _
      %p278 = scmp.le.s32.totalorder 1, %s23
      %p279 = scmp.lt.s32.totalorder %s23, 3
      %p280 = pnand %p278, %p279
      %p281 = pneg %p280
      // Predicated region
      $region33: #{tpu_custom_call.1} parent=5 // pred_check
        _
      $region34: #{tpu_custom_call.1} parent=5 // pred_check_branch
        %283 = sbr.rel (%p280) target = $region36
      $region35: #{tpu_custom_call.1} parent=5 // pred_region
        %s284 = ssub.s32 %s23, 1
        %s285 = sand.u32 %s50, 1
        %s286 = scalar_lea.sflag [#allocation3], %s285
        %s287 = sand.u32 %s50, 1
        %s288 = smul.addr %s287, 8
        %s289 = scalar_lea.vmem [#allocation2], %s288
        // Predicated region
        $region37: #{tpu_custom_call.1} parent=35 // pred_check
          %p290 = pneg %p63
        $region38: #{tpu_custom_call.1} parent=35 // pred_check_branch
          %292 = sbr.rel (%p290) target = $region40
        $region39: #{tpu_custom_call.1} parent=35 // pred_region
          %294 = dma.done %s286, 128
        $region40: #{tpu_custom_call.1} parent=35 // pred_fallthru
          _
        // Predicated region
        $region41: #{tpu_custom_call.1} parent=35 // pred_check
          %p295 = pneg %p84
        $region42: #{tpu_custom_call.1} parent=35 // pred_check_branch
          %297 = sbr.rel (%p295) target = $region44
        $region43: #{tpu_custom_call.1} parent=35 // pred_region
          %299 = dma.done [#allocation6], 16
        $region44: #{tpu_custom_call.1} parent=35 // pred_fallthru
          _
        // Predicated region
        $region45: #{tpu_custom_call.1} parent=35 // pred_check
          %p300 = pneg %p126
        $region46: #{tpu_custom_call.1} parent=35 // pred_check_branch
          %302 = sbr.rel (%p300) target = $region48
        $region47: #{tpu_custom_call.1} parent=35 // pred_region
          %304 = dma.done [#allocation6], 256
        $region48: #{tpu_custom_call.1} parent=35 // pred_fallthru
          _
        %s305 = sand.u32 %s50, 1
        %s306 = scalar_lea.sflag [#allocation3], %s305
        %s307 = sand.u32 %s50, 1
        %s308 = smul.addr %s307, 8
        %s309 = scalar_lea.vmem [#allocation2], %s308
        %p310 = pneg %p63
        %p311 = pneg %p60
        %p312 = pneg %p84
        %p313 = pneg %p81
        %p314 = pneg %p105
        %p315 = pneg %p102
        %p316 = pneg %p126
        %p317 = pneg %p123
        %p318 = pneg %p154
        %p319 = pneg %p151
        %s320 = sand.u32 %s141, 1
        %s321 = scalar_lea.sflag [#allocation4], %s320
        %s322 = sand.u32 %s141, 1
        %s323 = smul.addr %s322, 16
        %s324 = scalar_lea.vmem [#allocation8], %s323
        %p325 = pneg %p182
        %p326 = pneg %p179
        %s327 = sand.u32 %s28, 1
        %s328 = scalar_lea.sflag [#allocation10], %s327
        %s329 = sand.u32 %s169, 1
        %s330 = smul.addr %s329, 16
        %s331 = scalar_lea.vmem [#allocation9], %s330
        %p332 = pneg %p210
        %p333 = pneg %p207
        %s334 = sand.u32 %s28, 1
        %s335 = scalar_lea.sflag [#allocation10], %s334
        %s336 = sand.u32 %s197, 1
        %s337 = smul.addr %s336, 16
        %s338 = scalar_lea.vmem [#allocation11], %s337
        %v340 = vld [vmem:[%s289] sm:$0xff]
        %v341 = vld [vmem:[#allocation5] sm:$0x1]
        %v342 = vld [vmem:[%s2] sm:$0x1]
        %vm343 = vcmask 261120
        %v344 = vsel %vm343, %v340, 0.0
        %345 = vadd.xlane.f32.xlu0 %v344
        %v346 = vpop.xlane.xlu0 %345
        %v347 = vrcp.pop 32.0
        %v348 = vmul.f32 32.0, %v347
        %v349 = vsub.f32 1.0, %v348
        %v350 = vmul.f32 %v347, %v349
        %v351 = vadd.f32 %v347, %v350
        %vm352 = vweird.f32 %v347
        %v353 = vsel %vm352, %v347, %v351
        %v354 = vmul.f32 %v346, %v353
        %v355 = vsub.f32 %v340, %v354
        %v356 = vmul.f32 %v355, %v355
        %v357 = vsel %vm343, %v356, 0.0
        %358 = vadd.xlane.f32.xlu0 %v357
        %v359 = vpop.xlane.xlu0 %358
        %v360 = vmul.f32 %v359, %v353
        %v361 = vadd.f32 %v360, 1e-05
        %v362 = vrsqrt.pop %v361
        %v363 = vmul.f32 %v362, %v361
        %v364 = vmul.f32 %v363, %v362
        %v365 = vmul.f32 0.5, %v364
        %v366 = vsub.f32 1.5, %v365
        %v367 = vmul.f32 %v362, %v366
        %vm368 = vweird.f32 %v361
        %vm369 = vweird.f32 %v362
        %vm370 = vmor %vm368, %vm369
        %v371 = vsel %vm370, %v362, %v367
        %v372 = vmul.f32 %v355, %v371
        %v374 = vperm.slane %v341, 0
        %v376 = vmul.f32 %v372, %v374
        %v378 = vperm.slane %v342, 0
        %v380 = vadd.f32 %v376, %v378
        %v381 = vpack.c.bf16 %v380, %v380
        %v382 = vld [vmem:[#allocation7] sm:$0xf]
        %v383 = vld [vmem:[#allocation7 + $0x4] sm:$0xf]
        %v384 = vld [vmem:[#allocation7 + $0x8] sm:$0xf]
        %v385 = vld [vmem:[#allocation7 + $0xc] sm:$0xf]
        %v390 = vunpack.c.l.b16 %v382
        %v391 = vunpack.c.l.b16 %v383
        %v392 = vunpack.c.l.b16 %v384
        %v393 = vunpack.c.l.b16 %v385
        %v394 = vpack.c.b16 %v391, %v390
        %v395 = vpack.c.b16 %v393, %v392
        %v399 = vsel %vm343, %v381, 0
        %401 = vmatpush.bf16.msra.mxu0 0
        %402 = vmatpush.bf16.msra.mxu0 0
        %403 = vmatpush.bf16.msra.mxu0 0
        %404 = vmatpush.bf16.msra.mxu0 0
        %405 = vmatpush.bf16.msra.mxu0 0
        %406 = vmatpush.bf16.msra.mxu0 0
        %407 = vmatpush.bf16.msra.mxu0 %v395
        %408 = vmatpush.bf16.msra.mxu0 %v394
        %409 = vmatmul.bf16.gmra.mxu0 %v399
        %v410 = vpop.f32.mrf.mxu0
        %v411 = vadd.f32 0.0, %v410
        %v412 = vpop.f32.mrf.mxu0
        %413 = vdwg.mxu0
        %v414 = vpack.c.bf16 %v411, %v411
        %vm415 = vcmask 60416
        %416 = vst.msk [vmem:[%s324] sm:$0xf] %vm415, %v414
        %418 = vrot.lane.b32.xlu0 %v414, 96
        %v419 = vpop.permute.xlu0 %418
        %421 = vst.msk [vmem:[%s331] sm:$0xf] %vm415, %v419
        %422 = vrot.lane.b32.xlu0 %v414, 64
        %v423 = vpop.permute.xlu0 %422
        %425 = vst.msk [vmem:[%s338] sm:$0xf] %vm415, %v423
        %426 = vrot.lane.b32.xlu0 %v414, 120
        %v427 = vpop.permute.xlu0 %426
        %s429 = scalar_lea.vmem %s324, 4 [#allocation8]
        %430 = vst.msk [vmem:[%s429] sm:$0xf] %vm415, %v427
        %431 = vrot.lane.b32.xlu0 %v414, 88
        %v432 = vpop.permute.xlu0 %431
        %s434 = scalar_lea.vmem %s331, 4 [#allocation9]
        %435 = vst.msk [vmem:[%s434] sm:$0xf] %vm415, %v432
        %436 = vrot.lane.b32.xlu0 %v414, 56
        %v437 = vpop.permute.xlu0 %436
        %s439 = scalar_lea.vmem %s338, 4 [#allocation11]
        %440 = vst.msk [vmem:[%s439] sm:$0xf] %vm415, %v437
        %441 = vrot.lane.b32.xlu0 %v414, 112
        %v442 = vpop.permute.xlu0 %441
        %s444 = scalar_lea.vmem %s324, 8 [#allocation8]
        %445 = vst.msk [vmem:[%s444] sm:$0xf] %vm415, %v442
        %446 = vrot.lane.b32.xlu0 %v414, 80
        %v447 = vpop.permute.xlu0 %446
        %s449 = scalar_lea.vmem %s331, 8 [#allocation9]
        %450 = vst.msk [vmem:[%s449] sm:$0xf] %vm415, %v447
        %451 = vrot.lane.b32.xlu0 %v414, 48
        %v452 = vpop.permute.xlu0 %451
        %s454 = scalar_lea.vmem %s338, 8 [#allocation11]
        %455 = vst.msk [vmem:[%s454] sm:$0xf] %vm415, %v452
        %456 = vrot.lane.b32.xlu0 %v414, 104
        %v457 = vpop.permute.xlu0 %456
        %s459 = scalar_lea.vmem %s324, 12 [#allocation8]
        %460 = vst.msk [vmem:[%s459] sm:$0xf] %vm415, %v457
        %461 = vrot.lane.b32.xlu0 %v414, 72
        %v462 = vpop.permute.xlu0 %461
        %s464 = scalar_lea.vmem %s331, 12 [#allocation9]
        %465 = vst.msk [vmem:[%s464] sm:$0xf] %vm415, %v462
        %466 = vrot.lane.b32.xlu0 %v414, 40
        %v467 = vpop.permute.xlu0 %466
        %s469 = scalar_lea.vmem %s338, 12 [#allocation11]
        %470 = vst.msk [vmem:[%s469] sm:$0xf] %vm415, %v467
        %s471 = sand.u32 %s141, 1
        %s472 = scalar_lea.sflag [#allocation4], %s471
        %s473 = sand.u32 %s141, 1
        %s474 = smul.addr %s473, 16
        %s475 = scalar_lea.vmem [#allocation8], %s474
        %s476 = sand.u32 %s28, 1
        %s477 = scalar_lea.sflag [#allocation10], %s476
        %s478 = sand.u32 %s169, 1
        %s479 = smul.addr %s478, 16
        %s480 = scalar_lea.vmem [#allocation9], %s479
        %s481 = sand.u32 %s28, 1
        %s482 = scalar_lea.sflag [#allocation10], %s481
        %s483 = sand.u32 %s197, 1
        %s484 = smul.addr %s483, 16
        %s485 = scalar_lea.vmem [#allocation11], %s484
        // Predicated region
        $region49: #{tpu_custom_call.1} parent=35 // pred_check
          %p486 = pneg %p151
        $region50: #{tpu_custom_call.1} parent=35 // pred_check_branch
          %488 = sbr.rel (%p486) target = $region52
        $region51: #{tpu_custom_call.1} parent=35 // pred_region
          %490 = vsyncadd %s472, 0
          %s491 = smul.addr %s32, 4
          %s492 = sadd.s32 %s33, %s491
          %s493 = smul.addr %s492, 4
          %s494 = scalar_lea.hbm %s4, %s493
          %s495 = sshll.u32 %s475, 4
          %s496 = int_to_ptr.vmem [resolvable:$true] %s495
          %s497 = sshll.u32 %s494, 4
          %s498 = int_to_ptr.hbm [resolvable:$true] %s497
          %503 = dma.vmem_to_hbm [thread:$0]  %s496, 256, %s498, %s472, 64, 64, 4
        $region52: #{tpu_custom_call.1} parent=35 // pred_fallthru
          _
        // Predicated region
        $region53: #{tpu_custom_call.1} parent=35 // pred_check
          %p504 = pneg %p179
        $region54: #{tpu_custom_call.1} parent=35 // pred_check_branch
          %506 = sbr.rel (%p504) target = $region56
        $region55: #{tpu_custom_call.1} parent=35 // pred_region
          %508 = vsyncadd %s477, 0
          %s509 = smul.addr %s32, 4
          %s510 = sadd.s32 %s33, %s509
          %s511 = smul.addr %s510, 4
          %s512 = scalar_lea.hbm %s5, %s511
          %s513 = sshll.u32 %s480, 4
          %s514 = int_to_ptr.vmem [resolvable:$true] %s513
          %s515 = sshll.u32 %s512, 4
          %s516 = int_to_ptr.hbm [resolvable:$true] %s515
          %521 = dma.vmem_to_hbm [thread:$0]  %s514, 256, %s516, %s477, 64, 64, 4
        $region56: #{tpu_custom_call.1} parent=35 // pred_fallthru
          _
        // Predicated region
        $region57: #{tpu_custom_call.1} parent=35 // pred_check
          %p522 = pneg %p207
        $region58: #{tpu_custom_call.1} parent=35 // pred_check_branch
          %524 = sbr.rel (%p522) target = $region60
        $region59: #{tpu_custom_call.1} parent=35 // pred_region
          %526 = vsyncadd %s482, 0
          %s527 = smul.addr %s32, 4
          %s528 = sadd.s32 %s33, %s527
          %s529 = smul.addr %s528, 4
          %s530 = scalar_lea.hbm %s6, %s529
          %s531 = sshll.u32 %s485, 4
          %s532 = int_to_ptr.vmem [resolvable:$true] %s531
          %s533 = sshll.u32 %s530, 4
          %s534 = int_to_ptr.hbm [resolvable:$true] %s533
          %539 = dma.vmem_to_hbm [thread:$0]  %s532, 256, %s534, %s482, 64, 64, 4
        $region60: #{tpu_custom_call.1} parent=35 // pred_fallthru
          _
      $region36: #{tpu_custom_call.1} parent=5 // pred_fallthru
        _
      %p540 = scmp.le.s32.totalorder 2, %s23
      // Predicated region
      $region61: #{tpu_custom_call.1} parent=5 // pred_check
        %p541 = pneg %p540
      $region62: #{tpu_custom_call.1} parent=5 // pred_check_branch
        %543 = sbr.rel (%p541) target = $region64
      $region63: #{tpu_custom_call.1} parent=5 // pred_region
        %s544 = ssub.s32 %s23, 2
        // Predicated region
        $region65: #{tpu_custom_call.1} parent=63 // pred_check
          %p545 = pneg %p157
        $region66: #{tpu_custom_call.1} parent=63 // pred_check_branch
          %547 = sbr.rel (%p545) target = $region68
        $region67: #{tpu_custom_call.1} parent=63 // pred_region
          %s548 = sand.u32 %s142, 1
          %s549 = scalar_lea.sflag [#allocation4], %s548
          %s550 = sand.u32 %s142, 1
          %s551 = smul.addr %s550, 16
          %s552 = scalar_lea.vmem [#allocation8], %s551
          %554 = dma.done %s549, 256
        $region68: #{tpu_custom_call.1} parent=63 // pred_fallthru
          _
        // Predicated region
        $region69: #{tpu_custom_call.1} parent=63 // pred_check
          %p555 = pneg %p185
        $region70: #{tpu_custom_call.1} parent=63 // pred_check_branch
          %557 = sbr.rel (%p555) target = $region72
        $region71: #{tpu_custom_call.1} parent=63 // pred_region
          %s558 = sand.u32 %s29, 1
          %s559 = scalar_lea.sflag [#allocation10], %s558
          %s560 = sand.u32 %s170, 1
          %s561 = smul.addr %s560, 16
          %s562 = scalar_lea.vmem [#allocation9], %s561
          %564 = dma.done %s559, 256
        $region72: #{tpu_custom_call.1} parent=63 // pred_fallthru
          _
        // Predicated region
        $region73: #{tpu_custom_call.1} parent=63 // pred_check
          %p565 = pneg %p213
        $region74: #{tpu_custom_call.1} parent=63 // pred_check_branch
          %567 = sbr.rel (%p565) target = $region76
        $region75: #{tpu_custom_call.1} parent=63 // pred_region
          %s568 = sand.u32 %s29, 1
          %s569 = scalar_lea.sflag [#allocation10], %s568
          %s570 = sand.u32 %s198, 1
          %s571 = smul.addr %s570, 16
          %s572 = scalar_lea.vmem [#allocation11], %s571
          %574 = dma.done %s569, 256
        $region76: #{tpu_custom_call.1} parent=63 // pred_fallthru
          _
      $region64: #{tpu_custom_call.1} parent=5 // pred_fallthru
        _
    $region6: #{tpu_custom_call.1} parent=1 // loop_footer
      %s27 = sadd.s32 1, %s23
    $region7: #{tpu_custom_call.1} parent=1 // loop_footer_branch
      %22 = sbr.rel target = $region3
    $region8: #{tpu_custom_call.1} parent=1 // loop_exit
      _
    %575 = vsyncpa [#allocation3], 1
    %s576 = scalar_lea.sflag [#allocation3], 1
    %577 = vsyncpa %s576, 1
    %578 = vsyncpa [#allocation6], 1
    %579 = vsyncpa [#allocation4], 1
    %s580 = scalar_lea.sflag [#allocation4], 1
    %581 = vsyncpa %s580, 1
    %582 = vsyncpa [#allocation10], 1
    %s583 = scalar_lea.sflag [#allocation10], 1
    %584 = vsyncpa %s583, 1

</llo_original>
